<compile_context>
chip_gen: v5e
topology: v5e:2x2
jax: 0.10.0
libtpu: 0.0.40
codegen_flags: <defaults>
</compile_context>

<pallas_src>
import functools

import jax
import jax.numpy as jnp
from jax.experimental import pallas as pl
from jax.experimental.pallas import tpu as pltpu


def _round_up(x, m):
    return ((x + m - 1) // m) * m


# ---------------------------------------------------------------------------
# Fused Pallas kernel: num_layers x (XW -> A@XW -> +b -> ReLU) + attention softmax
# ---------------------------------------------------------------------------
def _fused_gnn_kernel(a_ref, x_ref, w_ref, b_ref, attw_ref, o_ref, *, probs_lane):
    num_layers = w_ref.shape[0]
    act = x_ref[...]                                    # (N, P) bf16, resident in VMEM
    h = None
    for l in range(num_layers):                         # static unroll over layers
        xw = jnp.dot(act, w_ref[l], preferred_element_type=jnp.float32)      # (N, P) f32
        h = jnp.dot(a_ref[...], xw.astype(jnp.bfloat16),
                    preferred_element_type=jnp.float32) + b_ref[l]           # propagate + bias
        h = jnp.maximum(h, 0.0)                         # ReLU (dropout is identity in eval)
        act = h.astype(jnp.bfloat16)

    # Attention: scores = h @ w_att ; softmax over the node axis (dim=0); attended = h * p.
    scores = jnp.dot(h, attw_ref[...], preferred_element_type=jnp.float32)   # (N, 1)
    m = jnp.max(scores, axis=0, keepdims=True)
    e = jnp.exp(scores - m)
    probs = e / jnp.sum(e, axis=0, keepdims=True)       # (N, 1), exact divide

    attended = h * probs                                # (N, P); padded cols of h are 0
    # Fold the probs column into spare lane `probs_lane` of the lane-dense output so the
    # kernel performs a single unmasked 128-lane-wide store.
    lane = jax.lax.broadcasted_iota(jnp.int32, attended.shape, 1)
    o_ref[...] = jnp.where(lane == probs_lane, probs, attended)


def fused_gnn_encoder(a_norm_bf16, x_pad, w_stack, b_stack, att_w_pad, hidden_dim):
    n, p = x_pad.shape
    num_layers = w_stack.shape[0]
    flops = num_layers * (2 * n * p * p + 2 * n * n * p) + 3 * n * p
    bytes_accessed = (a_norm_bf16.size * 2 + x_pad.size * 2 + w_stack.size * 2
                      + b_stack.size * 4 + att_w_pad.size * 4 + n * p * 4)
    out = pl.pallas_call(
        functools.partial(_fused_gnn_kernel, probs_lane=hidden_dim),
        out_shape=jax.ShapeDtypeStruct((n, p), jnp.float32),
        in_specs=[pl.BlockSpec(memory_space=pltpu.MemorySpace.VMEM)] * 5,
        out_specs=pl.BlockSpec(memory_space=pltpu.MemorySpace.VMEM),
        cost_estimate=pl.CostEstimate(
            flops=flops, transcendentals=n, bytes_accessed=bytes_accessed),
    )(a_norm_bf16, x_pad, w_stack, b_stack, att_w_pad)
    attended_x = out[:, :hidden_dim]          # (N, H)
    attention_weights = out[:, hidden_dim]    # (N,)   <- probs column folded into the output
    return attended_x, attention_weights


# ---------------------------------------------------------------------------
# Glue: dense normalized adjacency (PyG GCNConv normalization, self-loops added).
# Built ONCE outside the per-forward path (static graph).
# TODO(synk): for directed graphs with asymmetric degrees this in-degree-based
#             symmetric normalization can differ from PyG's gcn_norm; for large/sparse
#             graphs replace the dense N^2 adjacency with a scalar-prefetch gather kernel.
# ---------------------------------------------------------------------------
def build_norm_adj(edge_index, num_nodes):
    src, dst = edge_index[0], edge_index[1]
    loop = jnp.arange(num_nodes, dtype=src.dtype)
    src = jnp.concatenate([src, loop])
    dst = jnp.concatenate([dst, loop])
    a = jnp.zeros((num_nodes, num_nodes), jnp.float32).at[dst, src].add(1.0)
    deg = jnp.sum(a, axis=1)                                   # degree incl. self-loop
    dinv = jnp.where(deg > 0, 1.0 / jnp.sqrt(deg), 0.0)
    return dinv[:, None] * a * dinv[None, :]


# ---------------------------------------------------------------------------
# Parameter init (deterministic, Xavier/Glorot uniform like PyG / nn.init)
# ---------------------------------------------------------------------------
def glorot_uniform(key, fan_in, fan_out):
    limit = jnp.sqrt(6.0 / (fan_in + fan_out))
    return jax.random.uniform(key, (fan_in, fan_out), jnp.float32, -limit, limit)


def init_gnn_encoder(key, input_dim, hidden_dim, num_layers):
    params = {"conv_w": [], "conv_b": []}
    dims = [input_dim] + [hidden_dim] * num_layers
    for i in range(num_layers):
        key, wk = jax.random.split(key)
        params["conv_w"].append(glorot_uniform(wk, dims[i], dims[i + 1]))
        params["conv_b"].append(jnp.zeros((1, dims[i + 1]), jnp.float32))
    key, ak = jax.random.split(key)
    params["att_w"] = glorot_uniform(ak, hidden_dim, 1)
    return params


# ---------------------------------------------------------------------------
# Forward pass: pad/stack params to a uniform 128-lane tile, call the fused kernel.
# ---------------------------------------------------------------------------
@jax.jit
def gnn_encoder_forward(params, x, a_norm):
    num_nodes, input_dim = x.shape
    hidden_dim = params["conv_w"][0].shape[1]
    num_layers = len(params["conv_w"])

    # +1 reserves a guaranteed-zero lane for the folded-in probs column.
    p = _round_up(max(input_dim, hidden_dim + 1), 128)

    x_pad = jnp.zeros((num_nodes, p), jnp.bfloat16)
    x_pad = x_pad.at[:, :input_dim].set(x.astype(jnp.bfloat16))

    w_stack = jnp.zeros((num_layers, p, p), jnp.bfloat16)
    b_stack = jnp.zeros((num_layers, 1, p), jnp.float32)
    for l in range(num_layers):
        w = params["conv_w"][l]
        b = params["conv_b"][l]
        w_stack = w_stack.at[l, : w.shape[0], : w.shape[1]].set(w.astype(jnp.bfloat16))
        b_stack = b_stack.at[l, 0, : b.shape[-1]].set(b.reshape(-1))

    att_w_pad = jnp.zeros((p, 1), jnp.float32).at[:hidden_dim, :].set(params["att_w"])

    return fused_gnn_encoder(a_norm.astype(jnp.bfloat16), x_pad, w_stack, b_stack,
                             att_w_pad, hidden_dim)


# ---------------------------------------------------------------------------
# Main
# ---------------------------------------------------------------------------
if __name__ == "__main__":
    NUM_NODES = 16
    INPUT_DIM = 8
    HIDDEN_DIM = 32
    NUM_LAYERS = 2

    key = jax.random.PRNGKey(0)
    key, xk = jax.random.split(key)
    x = jax.random.normal(xk, (NUM_NODES, INPUT_DIM), jnp.float32)

    # Deterministic ring graph (bidirectional edges).
    src = jnp.arange(NUM_NODES, dtype=jnp.int32)
    dst = (src + 1) % NUM_NODES
    edge_index = jnp.stack(
        [jnp.concatenate([src, dst]), jnp.concatenate([dst, src])], axis=0
    )  # shape (2, 2*NUM_NODES)

    params = init_gnn_encoder(key, INPUT_DIM, HIDDEN_DIM, NUM_LAYERS)

    # Adjacency is static for a fixed graph: build once, outside the jitted forward.
    a_norm = build_norm_adj(edge_index, NUM_NODES)

    attended_x, attention_weights = gnn_encoder_forward(params, x, a_norm)
    jax.block_until_ready((attended_x, attention_weights))

    assert attended_x.shape == (NUM_NODES, HIDDEN_DIM)
    assert attention_weights.shape == (NUM_NODES,)
    assert jnp.allclose(jnp.sum(attention_weights), 1.0, atol=1e-5)

    print("KERNEL_OK")
</pallas_src>

<mosaic_0001>
module attributes {stable_mosaic.version = 11 : i64} {
  func.func @_fused_gnn_kernel(%arg0: memref<16x16xbf16, #tpu.memory_space<vmem>>, %arg1: memref<16x128xbf16, #tpu.memory_space<vmem>>, %arg2: memref<2x128x128xbf16, #tpu.memory_space<vmem>>, %arg3: memref<2x1x128xf32, #tpu.memory_space<vmem>>, %arg4: memref<128x1xf32, #tpu.memory_space<vmem>>, %arg5: memref<16x128xf32, #tpu.memory_space<vmem>>) attributes {dimension_semantics = [], scalar_prefetch = 0 : i64, scratch_operands = 0 : i64, tpu.core_type = #tpu.core_type<tc>} {
    %c0 = arith.constant 0 : index
    %c0_0 = arith.constant 0 : index
    %0 = vector.load %arg1[%c0, %c0_0] : memref<16x128xbf16, #tpu.memory_space<vmem>>, vector<16x128xbf16>
    %c0_1 = arith.constant 0 : index
    %c0_2 = arith.constant 0 : index
    %c0_3 = arith.constant 0 : index
    %1 = vector.load %arg2[%c0_1, %c0_2, %c0_3] : memref<2x128x128xbf16, #tpu.memory_space<vmem>>, vector<1x128x128xbf16>
    %2 = vector.shape_cast %1 : vector<1x128x128xbf16> to vector<128x128xbf16>
    %cst = arith.constant dense<0.000000e+00> : vector<16x128xf32>
    %3 = tpu.matmul %0, %2, %cst {dimension_numbers = #tpu.dot_dimension_numbers<[1], [0], [0], [1], [0, 0, 1, 1], [], []>} : vector<16x128xbf16>, vector<128x128xbf16>, vector<16x128xf32> -> vector<16x128xf32>
    %c0_4 = arith.constant 0 : index
    %c0_5 = arith.constant 0 : index
    %4 = vector.load %arg0[%c0_4, %c0_5] : memref<16x16xbf16, #tpu.memory_space<vmem>>, vector<16x16xbf16>
    %5 = arith.truncf %3 : vector<16x128xf32> to vector<16x128xbf16>
    %cst_6 = arith.constant dense<0.000000e+00> : vector<16x128xf32>
    %6 = tpu.matmul %4, %5, %cst_6 {dimension_numbers = #tpu.dot_dimension_numbers<[1], [0], [0], [1], [0, 0, 1, 1], [], []>} : vector<16x16xbf16>, vector<16x128xbf16>, vector<16x128xf32> -> vector<16x128xf32>
    %c0_7 = arith.constant 0 : index
    %c0_8 = arith.constant 0 : index
    %c0_9 = arith.constant 0 : index
    %7 = vector.load %arg3[%c0_7, %c0_8, %c0_9] : memref<2x1x128xf32, #tpu.memory_space<vmem>>, vector<1x1x128xf32>
    %8 = vector.shape_cast %7 : vector<1x1x128xf32> to vector<1x128xf32>
    %9 = vector.broadcast %8 : vector<1x128xf32> to vector<16x128xf32>
    %10 = arith.addf %6, %9 : vector<16x128xf32>
    %cst_10 = arith.constant 0.000000e+00 : f32
    %11 = vector.broadcast %cst_10 : f32 to vector<16x128xf32>
    %12 = arith.maximumf %10, %11 : vector<16x128xf32>
    %13 = arith.truncf %12 : vector<16x128xf32> to vector<16x128xbf16>
    %c1 = arith.constant 1 : index
    %c0_11 = arith.constant 0 : index
    %c0_12 = arith.constant 0 : index
    %14 = vector.load %arg2[%c1, %c0_11, %c0_12] : memref<2x128x128xbf16, #tpu.memory_space<vmem>>, vector<1x128x128xbf16>
    %15 = vector.shape_cast %14 : vector<1x128x128xbf16> to vector<128x128xbf16>
    %cst_13 = arith.constant dense<0.000000e+00> : vector<16x128xf32>
    %16 = tpu.matmul %13, %15, %cst_13 {dimension_numbers = #tpu.dot_dimension_numbers<[1], [0], [0], [1], [0, 0, 1, 1], [], []>} : vector<16x128xbf16>, vector<128x128xbf16>, vector<16x128xf32> -> vector<16x128xf32>
    %c0_14 = arith.constant 0 : index
    %c0_15 = arith.constant 0 : index
    %17 = vector.load %arg0[%c0_14, %c0_15] : memref<16x16xbf16, #tpu.memory_space<vmem>>, vector<16x16xbf16>
    %18 = arith.truncf %16 : vector<16x128xf32> to vector<16x128xbf16>
    %cst_16 = arith.constant dense<0.000000e+00> : vector<16x128xf32>
    %19 = tpu.matmul %17, %18, %cst_16 {dimension_numbers = #tpu.dot_dimension_numbers<[1], [0], [0], [1], [0, 0, 1, 1], [], []>} : vector<16x16xbf16>, vector<16x128xbf16>, vector<16x128xf32> -> vector<16x128xf32>
    %c1_17 = arith.constant 1 : index
    %c0_18 = arith.constant 0 : index
    %c0_19 = arith.constant 0 : index
    %20 = vector.load %arg3[%c1_17, %c0_18, %c0_19] : memref<2x1x128xf32, #tpu.memory_space<vmem>>, vector<1x1x128xf32>
    %21 = vector.shape_cast %20 : vector<1x1x128xf32> to vector<1x128xf32>
    %22 = vector.broadcast %21 : vector<1x128xf32> to vector<16x128xf32>
    %23 = arith.addf %19, %22 : vector<16x128xf32>
    %cst_20 = arith.constant 0.000000e+00 : f32
    %24 = vector.broadcast %cst_20 : f32 to vector<16x128xf32>
    %25 = arith.maximumf %23, %24 : vector<16x128xf32>
    %c0_21 = arith.constant 0 : index
    %c0_22 = arith.constant 0 : index
    %26 = vector.load %arg4[%c0_21, %c0_22] : memref<128x1xf32, #tpu.memory_space<vmem>>, vector<128x1xf32>
    %cst_23 = arith.constant dense<0.000000e+00> : vector<16x1xf32>
    %27 = tpu.matmul %25, %26, %cst_23 {dimension_numbers = #tpu.dot_dimension_numbers<[1], [0], [0], [1], [0, 0, 1, 1], [], []>} : vector<16x128xf32>, vector<128x1xf32>, vector<16x1xf32> -> vector<16x1xf32>
    %cst_24 = arith.constant dense<0xFF800000> : vector<1xf32>
    %28 = vector.multi_reduction <maximumf>, %27, %cst_24 [0] : vector<16x1xf32> to vector<1xf32>
    %29 = vector.shape_cast %28 : vector<1xf32> to vector<1x1xf32>
    %30 = vector.broadcast %29 : vector<1x1xf32> to vector<16x1xf32>
    %31 = arith.subf %27, %30 : vector<16x1xf32>
    %32 = math.exp %31 : vector<16x1xf32>
    %cst_25 = arith.constant dense<0.000000e+00> : vector<1xf32>
    %33 = vector.multi_reduction <add>, %32, %cst_25 [0] : vector<16x1xf32> to vector<1xf32>
    %34 = vector.shape_cast %33 : vector<1xf32> to vector<1x1xf32>
    %35 = vector.broadcast %34 : vector<1x1xf32> to vector<16x1xf32>
    %36 = arith.divf %32, %35 : vector<16x1xf32>
    %37 = vector.broadcast %36 : vector<16x1xf32> to vector<16x128xf32>
    %38 = arith.mulf %25, %37 : vector<16x128xf32>
    %39 = tpu.iota {dimensions = array<i32: 1>} : vector<16x128xi32>
    %c32_i32 = arith.constant 32 : i32
    %40 = vector.broadcast %c32_i32 : i32 to vector<16x128xi32>
    %41 = arith.cmpi eq, %39, %40 : vector<16x128xi32>
    %42 = vector.shape_cast %36 : vector<16x1xf32> to vector<16x1xf32>
    %43 = vector.broadcast %42 : vector<16x1xf32> to vector<16x128xf32>
    %44 = arith.select %41, %43, %38 : vector<16x128xi1>, vector<16x128xf32>
    %c0_26 = arith.constant 0 : index
    %c0_27 = arith.constant 0 : index
    %45 = vector.load %arg5[%c0_26, %c0_27] : memref<16x128xf32, #tpu.memory_space<vmem>>, vector<16x128xf32>
    tpu.vector_store %arg5[%c0_26, %c0_27], %44 {strides = array<i32>} : memref<16x128xf32, #tpu.memory_space<vmem>>, vector<16x128xf32>,
    return
  }
}

</mosaic_0001>

<llo_original>
// kernel: gnn_encoder_forward.1
$region0: #{gnn_encoder_forward.1}
  #allocation0 [shape = 'u32[]', space=smem, size = 0x4, offset = 0x4, fixed_abs, tag = 'smem constant byte address 0x4 - core index']
  #allocation1 [shape = 'u32[72,128]{1,0:T(1,128)}', space=vmem, size = 0x9000, scoped, tag = 'internal scratch']
  %s0 = inlined_call_operand.vmem [shape: bf16[16,16], index: 0, kind: input, shape index: {}]
  %s1 = inlined_call_operand.vmem [shape: bf16[16,128], index: 1, kind: input, shape index: {}]
  %s2 = inlined_call_operand.vmem [shape: bf16[2,128,128], index: 2, kind: input, shape index: {}]
  %s3 = inlined_call_operand.vmem [shape: f32[2,1,128], index: 3, kind: input, shape index: {}]
  %s4 = inlined_call_operand.vmem [shape: f32[128,1], index: 4, kind: input, shape index: {}]
  %s5 = inlined_call_operand.vmem [shape: f32[16,128], index: 5, kind: output, shape index: {}]
  %s6 = sld [smem:[#allocation0]]
  $region30: #{gnn_encoder_forward.1} parent=0
    _
  %s8 = ssub.s32 1, %s6
  %s9 = scalar_select 0, %s8, %s6
  // Predicated region
  $region2: #{gnn_encoder_forward.1} parent=0 // pred_check
    _
  $region3: #{gnn_encoder_forward.1} parent=0 // pred_check_branch
    %11 = sbr.rel (0) target = $region5
  $region4: #{gnn_encoder_forward.1} parent=0 // pred_region
    _
  $region5: #{gnn_encoder_forward.1} parent=0 // pred_fallthru
    _
  // Predicated region
  $region6: #{gnn_encoder_forward.1} parent=0 // pred_check
    _
  $region7: #{gnn_encoder_forward.1} parent=0 // pred_check_branch
    %13 = sbr.rel (0) target = $region9
  $region8: #{gnn_encoder_forward.1} parent=0 // pred_region
    _
  $region9: #{gnn_encoder_forward.1} parent=0 // pred_fallthru
    _
  // Predicated region
  $region10: #{gnn_encoder_forward.1} parent=0 // pred_check
    _
  $region11: #{gnn_encoder_forward.1} parent=0 // pred_check_branch
    %15 = sbr.rel (0) target = $region13
  $region12: #{gnn_encoder_forward.1} parent=0 // pred_region
    _
  $region13: #{gnn_encoder_forward.1} parent=0 // pred_fallthru
    _
  // Predicated region
  $region14: #{gnn_encoder_forward.1} parent=0 // pred_check
    _
  $region15: #{gnn_encoder_forward.1} parent=0 // pred_check_branch
    %17 = sbr.rel (0) target = $region17
  $region16: #{gnn_encoder_forward.1} parent=0 // pred_region
    _
  $region17: #{gnn_encoder_forward.1} parent=0 // pred_fallthru
    _
  // Predicated region
  $region18: #{gnn_encoder_forward.1} parent=0 // pred_check
    _
  $region19: #{gnn_encoder_forward.1} parent=0 // pred_check_branch
    %19 = sbr.rel (0) target = $region21
  $region20: #{gnn_encoder_forward.1} parent=0 // pred_region
    _
  $region21: #{gnn_encoder_forward.1} parent=0 // pred_fallthru
    _
  %v21 = vld [vmem:[%s1] sm:$0xf]
  %v22 = vld [vmem:[%s1 + $0x4] sm:$0xf]
  %v23 = vld [vmem:[%s2] sm:$0xf]
  %v24 = vld [vmem:[%s2 + $0x4] sm:$0xf]
  %v25 = vld [vmem:[%s2 + $0x8] sm:$0xf]
  %v26 = vld [vmem:[%s2 + $0xc] sm:$0xf]
  %v27 = vld [vmem:[%s2 + $0x10] sm:$0xf]
  %v28 = vld [vmem:[%s2 + $0x14] sm:$0xf]
  %v29 = vld [vmem:[%s2 + $0x18] sm:$0xf]
  %v30 = vld [vmem:[%s2 + $0x1c] sm:$0xf]
  %v31 = vld [vmem:[%s2 + $0x20] sm:$0xf]
  %v32 = vld [vmem:[%s2 + $0x24] sm:$0xf]
  %v33 = vld [vmem:[%s2 + $0x28] sm:$0xf]
  %v34 = vld [vmem:[%s2 + $0x2c] sm:$0xf]
  %v35 = vld [vmem:[%s2 + $0x30] sm:$0xf]
  %v36 = vld [vmem:[%s2 + $0x34] sm:$0xf]
  %v37 = vld [vmem:[%s2 + $0x38] sm:$0xf]
  %v38 = vld [vmem:[%s2 + $0x3c] sm:$0xf]
  %v41 = vunpack.c.l.b16 %v21
  %v42 = vunpack.c.l.b16 %v22
  %v43 = vpack.c.b16 %v42, %v41
  %v61 = vunpack.c.l.b16 %v23
  %v62 = vunpack.c.l.b16 %v24
  %v63 = vunpack.c.l.b16 %v25
  %v64 = vunpack.c.l.b16 %v26
  %v65 = vunpack.c.l.b16 %v27
  %v66 = vunpack.c.l.b16 %v28
  %v67 = vunpack.c.l.b16 %v29
  %v68 = vunpack.c.l.b16 %v30
  %v69 = vunpack.c.l.b16 %v31
  %v70 = vunpack.c.l.b16 %v32
  %v71 = vunpack.c.l.b16 %v33
  %v72 = vunpack.c.l.b16 %v34
  %v73 = vunpack.c.l.b16 %v35
  %v74 = vunpack.c.l.b16 %v36
  %v75 = vunpack.c.l.b16 %v37
  %v76 = vunpack.c.l.b16 %v38
  %v77 = vpack.c.b16 %v62, %v61
  %v78 = vpack.c.b16 %v64, %v63
  %v79 = vpack.c.b16 %v66, %v65
  %v80 = vpack.c.b16 %v68, %v67
  %v81 = vpack.c.b16 %v70, %v69
  %v82 = vpack.c.b16 %v72, %v71
  %v83 = vpack.c.b16 %v74, %v73
  %v84 = vpack.c.b16 %v76, %v75
  %93 = vmatpush.bf16.msra.mxu0 %v84
  %94 = vmatpush.bf16.msra.mxu0 %v83
  %95 = vmatpush.bf16.msra.mxu0 %v82
  %96 = vmatpush.bf16.msra.mxu0 %v81
  %97 = vmatpush.bf16.msra.mxu0 %v80
  %98 = vmatpush.bf16.msra.mxu0 %v79
  %99 = vmatpush.bf16.msra.mxu0 %v78
  %100 = vmatpush.bf16.msra.mxu0 %v77
  %101 = vmatmul.bf16.gmra.mxu0 %v43
  %v102 = vpop.f32.mrf.mxu0
  %v103 = vadd.f32 0.0, %v102
  %v104 = vpop.f32.mrf.mxu0
  %v105 = vadd.f32 0.0, %v104
  %106 = vdwg.mxu0
  %v107 = vld [vmem:[%s0] sm:$0xf]
  %v108 = vld [vmem:[%s0 + $0x4] sm:$0xf]
  %v109 = vpack.c.bf16 %v105, %v103
  %v110 = vld [vmem:[%s3] sm:$0x1]
  %v112 = vperm.slane %v110, 0
  %v116 = vunpack.c.l.b16 %v107
  %v117 = vunpack.c.l.b16 %v108
  %v118 = vpack.c.b16 %v117, %v116
  %vm119 = vcmask 130048
  %v121 = vsel %vm119, %v118, 0
  %123 = vmatpush.bf16.msra.mxu0 0
  %124 = vmatpush.bf16.msra.mxu0 0
  %125 = vmatpush.bf16.msra.mxu0 0
  %126 = vmatpush.bf16.msra.mxu0 0
  %127 = vmatpush.bf16.msra.mxu0 0
  %128 = vmatpush.bf16.msra.mxu0 0
  %129 = vmatpush.bf16.msra.mxu0 0
  %130 = vmatpush.bf16.msra.mxu0 %v109
  %131 = vmatmul.bf16.gmra.mxu0 %v121
  %v132 = vpop.f32.mrf.mxu0
  %v133 = vadd.f32 %v112, %v132
  %v134 = vpop.f32.mrf.mxu0
  %v135 = vadd.f32 %v112, %v134
  %136 = vdwg.mxu0
  %v137 = vmax.f32 %v133, 0.0
  %v138 = vmax.f32 %v135, 0.0
  %v139 = vpack.c.bf16 %v138, %v137
  %s140 = scalar_lea.vmem %s2, 64
  %v141 = vld [vmem:[%s140] sm:$0xf]
  %v142 = vld [vmem:[%s140 + $0x4] sm:$0xf]
  %v143 = vld [vmem:[%s140 + $0x8] sm:$0xf]
  %v144 = vld [vmem:[%s140 + $0xc] sm:$0xf]
  %v145 = vld [vmem:[%s140 + $0x10] sm:$0xf]
  %v146 = vld [vmem:[%s140 + $0x14] sm:$0xf]
  %v147 = vld [vmem:[%s140 + $0x18] sm:$0xf]
  %v148 = vld [vmem:[%s140 + $0x1c] sm:$0xf]
  %v149 = vld [vmem:[%s140 + $0x20] sm:$0xf]
  %v150 = vld [vmem:[%s140 + $0x24] sm:$0xf]
  %v151 = vld [vmem:[%s140 + $0x28] sm:$0xf]
  %v152 = vld [vmem:[%s140 + $0x2c] sm:$0xf]
  %v153 = vld [vmem:[%s140 + $0x30] sm:$0xf]
  %v154 = vld [vmem:[%s140 + $0x34] sm:$0xf]
  %v155 = vld [vmem:[%s140 + $0x38] sm:$0xf]
  %v156 = vld [vmem:[%s140 + $0x3c] sm:$0xf]
  %v173 = vunpack.c.l.b16 %v141
  %v174 = vunpack.c.l.b16 %v142
  %v175 = vunpack.c.l.b16 %v143
  %v176 = vunpack.c.l.b16 %v144
  %v177 = vunpack.c.l.b16 %v145
  %v178 = vunpack.c.l.b16 %v146
  %v179 = vunpack.c.l.b16 %v147
  %v180 = vunpack.c.l.b16 %v148
  %v181 = vunpack.c.l.b16 %v149
  %v182 = vunpack.c.l.b16 %v150
  %v183 = vunpack.c.l.b16 %v151
  %v184 = vunpack.c.l.b16 %v152
  %v185 = vunpack.c.l.b16 %v153
  %v186 = vunpack.c.l.b16 %v154
  %v187 = vunpack.c.l.b16 %v155
  %v188 = vunpack.c.l.b16 %v156
  %v189 = vpack.c.b16 %v174, %v173
  %v190 = vpack.c.b16 %v176, %v175
  %v191 = vpack.c.b16 %v178, %v177
  %v192 = vpack.c.b16 %v180, %v179
  %v193 = vpack.c.b16 %v182, %v181
  %v194 = vpack.c.b16 %v184, %v183
  %v195 = vpack.c.b16 %v186, %v185
  %v196 = vpack.c.b16 %v188, %v187
  %205 = vmatpush.bf16.msra.mxu0 %v196
  %206 = vmatpush.bf16.msra.mxu0 %v195
  %207 = vmatpush.bf16.msra.mxu0 %v194
  %208 = vmatpush.bf16.msra.mxu0 %v193
  %209 = vmatpush.bf16.msra.mxu0 %v192
  %210 = vmatpush.bf16.msra.mxu0 %v191
  %211 = vmatpush.bf16.msra.mxu0 %v190
  %212 = vmatpush.bf16.msra.mxu0 %v189
  %213 = vmatmul.bf16.gmra.mxu0 %v139
  %v214 = vpop.f32.mrf.mxu0
  %v215 = vadd.f32 0.0, %v214
  %v216 = vpop.f32.mrf.mxu0
  %v217 = vadd.f32 0.0, %v216
  %218 = vdwg.mxu0
  %v219 = vpack.c.bf16 %v217, %v215
  %s220 = scalar_lea.vmem %s3, 1
  %v221 = vld [vmem:[%s220] sm:$0x1]
  %v223 = vperm.slane %v221, 0
  %225 = vmatpush.bf16.msra.mxu0 0
  %226 = vmatpush.bf16.msra.mxu0 0
  %227 = vmatpush.bf16.msra.mxu0 0
  %228 = vmatpush.bf16.msra.mxu0 0
  %229 = vmatpush.bf16.msra.mxu0 0
  %230 = vmatpush.bf16.msra.mxu0 0
  %231 = vmatpush.bf16.msra.mxu0 0
  %232 = vmatpush.bf16.msra.mxu0 %v219
  %233 = vmatmul.bf16.gmra.mxu0 %v121
  %v234 = vpop.f32.mrf.mxu0
  %v235 = vadd.f32 %v223, %v234
  %v236 = vpop.f32.mrf.mxu0
  %v237 = vadd.f32 %v223, %v236
  %238 = vdwg.mxu0
  %v239 = vmax.f32 %v235, 0.0
  %v240 = vmax.f32 %v237, 0.0
  %v241 = vld [vmem:[%s4] sm:$0xff]
  %v242 = vld [vmem:[%s4 + $0x8] sm:$0xff]
  %v243 = vld [vmem:[%s4 + $0x10] sm:$0xff]
  %v244 = vld [vmem:[%s4 + $0x18] sm:$0xff]
  %v245 = vld [vmem:[%s4 + $0x20] sm:$0xff]
  %v246 = vld [vmem:[%s4 + $0x28] sm:$0xff]
  %v247 = vld [vmem:[%s4 + $0x30] sm:$0xff]
  %v248 = vld [vmem:[%s4 + $0x38] sm:$0xff]
  %v249 = vld [vmem:[%s4 + $0x40] sm:$0xff]
  %v250 = vld [vmem:[%s4 + $0x48] sm:$0xff]
  %v251 = vld [vmem:[%s4 + $0x50] sm:$0xff]
  %v252 = vld [vmem:[%s4 + $0x58] sm:$0xff]
  %v253 = vld [vmem:[%s4 + $0x60] sm:$0xff]
  %v254 = vld [vmem:[%s4 + $0x68] sm:$0xff]
  %v255 = vld [vmem:[%s4 + $0x70] sm:$0xff]
  %v256 = vld [vmem:[%s4 + $0x78] sm:$0xff]
  %257 = vmatpush.msra.mxu0 %v256
  %258 = vmatpush.msra.mxu0 %v255
  %259 = vmatpush.msra.mxu0 %v254
  %260 = vmatpush.msra.mxu0 %v253
  %261 = vmatpush.msra.mxu0 %v252
  %262 = vmatpush.msra.mxu0 %v251
  %263 = vmatpush.msra.mxu0 %v250
  %264 = vmatpush.msra.mxu0 %v249
  %265 = vmatpush.msra.mxu0 %v248
  %266 = vmatpush.msra.mxu0 %v247
  %267 = vmatpush.msra.mxu0 %v246
  %268 = vmatpush.msra.mxu0 %v245
  %269 = vmatpush.msra.mxu0 %v244
  %270 = vmatpush.msra.mxu0 %v243
  %271 = vmatpush.msra.mxu0 %v242
  %272 = vmatpush.msra.mxu0 %v241
  %273 = vmatmul.f32.gmra.mxu0 %v239
  %v274 = vpop.f32.mrf.mxu0
  %v275 = vadd.f32 0.0, %v274
  %276 = vmatmul.f32.gmra.mxu0 %v240
  %v277 = vpop.f32.mrf.mxu0
  %v278 = vadd.f32 0.0, %v277
  %279 = vdwg.mxu0
  %vm280 = vcmask 7168
  %v281 = vsel %vm280, %v275, -inf
  %v282 = vsel %vm280, %v278, -inf
  %v283 = vmax.f32 %v281, %v282
  %v284 = vrot.slane %v283, 4
  %v285 = vmax.f32 %v283, %v284
  %v286 = vrot.slane %v285, 2
  %v287 = vmax.f32 %v285, %v286
  %v288 = vrot.slane %v287, 1
  %v289 = vmax.f32 %v287, %v288
  %v290 = vsub.f32 %v275, %v289
  %v291 = vsub.f32 %v278, %v289
  %v292 = vmul.f32 %v290, 1.442695
  %v293 = vpow.pop %v292
  %v294 = vmul.f32 %v291, 1.442695
  %v295 = vpow.pop %v294
  %v296 = vsel %vm280, %v293, 0.0
  %v297 = vsel %vm280, %v295, 0.0
  %v298 = vadd.f32 %v296, %v297
  %v299 = vrot.slane %v298, 4
  %v300 = vadd.f32 %v298, %v299
  %v301 = vrot.slane %v300, 2
  %v302 = vadd.f32 %v300, %v301
  %v303 = vrot.slane %v302, 1
  %v304 = vadd.f32 %v302, %v303
  %v305 = vrcp.pop %v304
  %v306 = vmul.f32 %v304, %v305
  %v307 = vsub.f32 1.0, %v306
  %v308 = vmul.f32 %v305, %v307
  %v309 = vadd.f32 %v305, %v308
  %vm310 = vweird.f32 %v304
  %vm311 = vweird.f32 %v305
  %vm312 = vmor %vm310, %vm311
  %v313 = vsel %vm312, %v305, %v309
  %v314 = vand.u32 2147483647, %v304
  %vm315 = vcmp.eq.f32.partialorder %v314, 8.507059e+37
  %v316 = vand.u32 %v304, 2147483648
  %v317 = vor.u32 1.1754944e-38, %v316
  %v318 = vsel %vm315, %v317, %v313
  %v319 = vmul.f32 %v293, %v318
  %v320 = vmul.f32 %v295, %v318
  %322 = vset.pattern.permute.xlu0 0
  %323 = vperm.xlu0 %322, %v319
  %v324 = vpop.permute.xlu0 %323
  %327 = vset.pattern.permute.xlu0 0
  %328 = vperm.xlu0 %327, %v320
  %v329 = vpop.permute.xlu0 %328
  %v331 = vmul.f32 %v239, %v324
  %v332 = vmul.f32 %v240, %v329
  %v333 = vlaneseq
  %v334 = vand.u32 %v333, 127
  %vm335 = vcmp.eq.s32.totalorder %v334, 32
  %v336 = vsel %vm335, %v324, %v331
  %v337 = vsel %vm335, %v329, %v332
  %338 = vst [vmem:[%s5] sm:$0xff] %v336
  %339 = vst [vmem:[%s5 + $0x8] sm:$0xff] %v337
  // Predicated region
  $region22: #{gnn_encoder_forward.1} parent=0 // pred_check
    _
  $region23: #{gnn_encoder_forward.1} parent=0 // pred_check_branch
    %341 = sbr.rel (0) target = $region25
  $region24: #{gnn_encoder_forward.1} parent=0 // pred_region
    _
  $region25: #{gnn_encoder_forward.1} parent=0 // pred_fallthru
    _
  // Predicated region
  $region26: #{gnn_encoder_forward.1} parent=0 // pred_check
    _
  $region27: #{gnn_encoder_forward.1} parent=0 // pred_check_branch
    %343 = sbr.rel (0) target = $region29
  $region28: #{gnn_encoder_forward.1} parent=0 // pred_region
    _
  $region29: #{gnn_encoder_forward.1} parent=0 // pred_fallthru
    _

</llo_original>
